<compile_context>
chip_gen: v6e
topology: v6e:2x2x1
jax: 0.10.0
libtpu: 0.0.40
codegen_flags: <defaults>
</compile_context>

<pallas_src>
import functools
import math

import jax
import jax.numpy as jnp
from jax.experimental import pallas as pl
from jax.experimental.pallas import tpu as pltpu

_LN_10000 = math.log(10000.0)
_HALF_PI = math.pi / 2.0


def _pe_kernel(col_ref, o_ref):
    """Fill one (TS, E) row-tile of the sinusoidal table.

    col_ref: (2, E) f32, resident across the grid.
      row 0: inv_div[d] = 10000 ** (-(d & ~1) / E)
      row 1: phase[d]   = (d & 1) * pi/2   (folds cos into sin)
    """
    ts, _ = o_ref.shape
    i = pl.program_id(0)

    inv_div = col_ref[0:1, :]                                     # (1, E)
    phase = col_ref[1:2, :]                                       # (1, E)

    # Absolute position of each row in this tile (rows past max_len are
    # computed but clipped by Pallas on writeback of the ragged last tile).
    pos = (jax.lax.broadcasted_iota(jnp.int32, (ts, 1), 0)
           + i * ts).astype(jnp.float32)                          # (TS, 1)

    # One EUP sin per element; mul+add on the VPU via implicit broadcasting.
    angle = pos * inv_div + phase                                 # (TS, E)
    o_ref[...] = jnp.sin(angle).astype(o_ref.dtype)


def _tile_rows(max_len, embed_size, itemsize):
    """Row-tile: multiple of 8, ~6 MiB per tile (<=12 MiB double-buffered so it
    fits v5e's 16 MiB default scoped VMEM with headroom), and never fewer than
    2 grid steps when max_len allows (v7x megacore)."""
    rows = max(8, ((max_len + 7) // 8) * 8)
    target_bytes = 6 * (1 << 20)
    ts = target_bytes // max(1, embed_size * itemsize)
    ts = max(8, (ts // 8) * 8)
    ts = min(ts, rows)
    if rows > 8:
        half = ((rows // 2 + 7) // 8) * 8
        ts = min(ts, half)
    return ts


@functools.lru_cache(maxsize=None)
def build_positional_encoding_table(max_len, embed_size, dtype=jnp.float32):
    """Build pe[:max_len, :embed_size] with a single Pallas TPU kernel.

    dtype defaults to float32 (matches the PyTorch module); pass jnp.bfloat16
    to halve HBM writeback when the consumer tolerates it (math stays f32).
    """
    assert embed_size % 2 == 0, "embed_size must be even (same as the PyTorch module)"

    itemsize = jnp.dtype(dtype).itemsize
    ts = _tile_rows(max_len, embed_size, itemsize)
    grid = (pl.cdiv(max_len, ts),)

    # Column-only math, done once on the host-side JAX path (tiny: 2*E f32).
    dim = jnp.arange(embed_size, dtype=jnp.int32)
    two_i = (dim & ~1).astype(jnp.float32)              # dim rounded down to even
    parity = (dim & 1).astype(jnp.float32)              # 0 even, 1 odd
    inv_div = jnp.exp(two_i * jnp.float32(-_LN_10000 / embed_size))
    phase = parity * jnp.float32(_HALF_PI)
    col = jnp.stack([inv_div, phase], axis=0)            # (2, E) f32

    table = pl.pallas_call(
        _pe_kernel,
        out_shape=jax.ShapeDtypeStruct((max_len, embed_size), dtype),
        grid=grid,
        in_specs=[pl.BlockSpec((2, embed_size), lambda i: (0, 0))],
        out_specs=pl.BlockSpec((ts, embed_size), lambda i: (i, 0)),
        compiler_params=pltpu.CompilerParams(
            dimension_semantics=("parallel",)),
    )(col)
    return table


class PositionalEncoding:
    """Mirrors the PyTorch module: table built once in __init__, sliced in forward."""

    def __init__(self, max_len, embed_size, dropout=0.1):
        self.embed_size = embed_size
        self.dropout = dropout  # stored but never applied in forward (matches PyTorch)
        self.pe = build_positional_encoding_table(max_len, embed_size)

    def forward(self, x):
        batch_size, seq_len = x.shape
        return self.pe[:seq_len, :]

    __call__ = forward


def positional_encoding_forward(x, embed_size, max_len):
    """Functional form of PositionalEncoding.forward (table build is cached)."""
    _, seq_len = x.shape
    assert seq_len <= max_len, "seq_len must not exceed max_len"
    pe = build_positional_encoding_table(max_len, embed_size)
    return pe[:seq_len, :]


def _reference(seq_len, embed_size):
    # Pure-JAX reference replicating the torch __init__ construction.
    pos = jnp.arange(seq_len, dtype=jnp.float32)[:, None]
    two_i = jnp.arange(0, embed_size, 2, dtype=jnp.float32)
    div_term = jnp.power(jnp.float32(10000.0), two_i / jnp.float32(embed_size))
    pe = jnp.zeros((seq_len, embed_size), jnp.float32)
    pe = pe.at[:, 0::2].set(jnp.sin(pos / div_term))
    pe = pe.at[:, 1::2].set(jnp.cos(pos / div_term))
    return pe


if __name__ == "__main__":
    max_len = 16
    embed_size = 32
    batch_size, seq_len = 2, 8

    key = jax.random.PRNGKey(0)
    # x is a batch of token ids; only its shape matters for the forward pass.
    x = jax.random.randint(key, (batch_size, seq_len), 0, 100, dtype=jnp.int32)

    module = PositionalEncoding(max_len=max_len, embed_size=embed_size, dropout=0.1)
    out = module(x)
    out = jax.block_until_ready(out)

    ref = _reference(seq_len, embed_size)
    assert out.shape == (seq_len, embed_size)
    assert out.dtype == jnp.float32
    assert jnp.allclose(out, ref, atol=1e-5, rtol=1e-5), "mismatch vs reference"

    # Full-table check against the reference (exercises the ragged-free path).
    full = jax.block_until_ready(module.pe)
    full_ref = _reference(max_len, embed_size)
    assert jnp.allclose(full, full_ref, atol=1e-5, rtol=1e-5), "full table mismatch"

    # Functional path (uses the lru-cached table; no rebuild).
    out2 = jax.block_until_ready(
        positional_encoding_forward(x, embed_size=embed_size, max_len=max_len))
    assert jnp.allclose(out2, ref, atol=1e-5, rtol=1e-5), "functional path mismatch"

    print("KERNEL_OK")
</pallas_src>

<mosaic_0001>
module attributes {stable_mosaic.version = 11 : i64} {
  func.func @_pe_kernel(%arg0: i32, %arg1: memref<2x32xf32, #tpu.memory_space<vmem>>, %arg2: memref<8x32xf32, #tpu.memory_space<vmem>>) attributes {dimension_semantics = [#tpu.dimension_semantics<parallel>], iteration_bounds = array<i64: 2>, scalar_prefetch = 0 : i64, scratch_operands = 0 : i64, tpu.core_type = #tpu.core_type<tc>, window_params = [{pipeline_mode = #tpu.pipeline_mode<synchronous>, transform_indices = @transform_0, window_bounds = array<i64: 2, 32>}, {transform_indices = @transform_1, window_bounds = array<i64: 8, 32>}]} {
    %c0 = arith.constant 0 : index
    %c0_0 = arith.constant 0 : index
    %0 = vector.load %arg1[%c0, %c0_0] : memref<2x32xf32, #tpu.memory_space<vmem>>, vector<1x32xf32>
    %c1 = arith.constant 1 : index
    %c0_1 = arith.constant 0 : index
    %1 = vector.load %arg1[%c1, %c0_1] : memref<2x32xf32, #tpu.memory_space<vmem>>, vector<1x32xf32>
    %2 = tpu.iota {dimensions = array<i32: 0>} : vector<8x1xi32>
    %c8_i32 = arith.constant 8 : i32
    %3 = arith.muli %arg0, %c8_i32 : i32
    %4 = vector.broadcast %3 : i32 to vector<8x1xi32>
    %5 = arith.addi %2, %4 : vector<8x1xi32>
    %6 = arith.sitofp %5 : vector<8x1xi32> to vector<8x1xf32>
    %7 = vector.broadcast %6 : vector<8x1xf32> to vector<8x32xf32>
    %8 = vector.broadcast %0 : vector<1x32xf32> to vector<8x32xf32>
    %9 = arith.mulf %7, %8 : vector<8x32xf32>
    %10 = vector.broadcast %1 : vector<1x32xf32> to vector<8x32xf32>
    %11 = arith.addf %9, %10 : vector<8x32xf32>
    %12 = math.sin %11 : vector<8x32xf32>
    %c0_2 = arith.constant 0 : index
    %c0_3 = arith.constant 0 : index
    %13 = vector.load %arg2[%c0_2, %c0_3] : memref<8x32xf32, #tpu.memory_space<vmem>>, vector<8x32xf32>
    tpu.vector_store %arg2[%c0_2, %c0_3], %12 {strides = array<i32>} : memref<8x32xf32, #tpu.memory_space<vmem>>, vector<8x32xf32>,
    return
  }
  func.func @transform_0(%arg0: i32) -> (i32, i32) {
    %c0_i32 = arith.constant 0 : i32
    %c0_i32_0 = arith.constant 0 : i32
    %c0_i32_1 = arith.constant 0 : i32
    return %c0_i32, %c0_i32_0 : i32, i32
  }
  func.func @transform_1(%arg0: i32) -> (i32, i32) {
    %c0_i32 = arith.constant 0 : i32
    %c0_i32_0 = arith.constant 0 : i32
    return %arg0, %c0_i32 : i32, i32
  }
}

</mosaic_0001>

<llo_original>
// kernel: tpu_custom_call.1
$region0: #{tpu_custom_call.1}
  #allocation0 [shape = 'u32[]', space=smem, size = 0x4, offset = 0x4, fixed_abs, tag = 'smem constant byte address 0x4 - core index']
  #allocation1 [shape = 'u32[144,128]{1,0:T(1,128)}', space=vmem, size = 0x12000, scoped, tag = 'internal scratch']
  %s0 = inlined_call_operand.hbm [shape: f32[2,32], index: 0, kind: input, shape index: {}]
  %s1 = inlined_call_operand.hbm [shape: f32[16,32], index: 1, kind: output, shape index: {}]
  %s2 = sld [smem:[#allocation0]]
  $region41: #{tpu_custom_call.1} parent=0
    _
  %s4 = ssub.s32 1, %s2
  %s5 = scalar_select 0, %s4, %s2
  $region1: #{tpu_custom_call.1} parent=0
    #allocation2 [shape = 'u8[1024]{0}', space=vmem, size = 0x400, scoped, tag = 'input window, operand 0, single buffered']
    #allocation3 [shape = 's32[2]{0}', space=sflag, size = 0x8, scoped, tag = 'scoped memory for tpu_custom_call.1']
    #allocation4 [shape = 's32[2]{0}', space=sflag, size = 0x8, scoped, tag = 'scoped memory for tpu_custom_call.1']
    #allocation5 [shape = 'u8[8192]{0}', space=vmem, size = 0x2000, scoped, tag = 'output window, operand 0']
    %6 = vsyncpa [#allocation3], 0
    %7 = vsyncpa [#allocation4], 0
    %s8 = scalar_lea.sflag [#allocation4], 1
    %9 = vsyncpa %s8, 0
    loop: start=0, step=1, limit=4
    $region2: #{tpu_custom_call.1} parent=1 // loop_pre_header
      _
    $region3: #{tpu_custom_call.1} parent=1 // loop_header
      %s11 = sphi 0, %s15
      %p12 = scmp.ge.s32.totalorder %s11, 4
      %s19 = sphi 0, %s19
      %s21 = sphi 0, %s19
      %s22 = sphi 0, %s21
      %s36 = sphi 0, %s22
      %s42 = sphi 0, %s44
      %s45 = sphi 0, %s42
      %s46 = sphi 0, %s45
      %s62 = sphi 0, %s46
    $region4: #{tpu_custom_call.1} parent=1 // loop_header_branch
      %14 = sbr.rel (%p12) target = $region8
    $region5: #{tpu_custom_call.1} parent=1 // loop_body
      %s16 = ssub.s32 %s11, 1
      %s17 = ssub.s32 %s11, 2
      %s18 = sadd.s32 %s11, 1
      %s20 = sadd.s32 %s19, 1
      %p23 = scmp.eq.s32.totalorder %s11, 1
      %p24 = scmp.ne.s32.totalorder %s19, %s21
      %p25 = scmp.eq.s32.totalorder %s11, 0
      %p26 = por %p24, %p25
      %p27 = scmp.ne.s32.totalorder %s19, %s21
      %p28 = scmp.eq.s32.totalorder %s16, 1
      %p29 = por %p27, %p28
      %p30 = scmp.ne.s32.totalorder %s21, %s22
      %p31 = scmp.eq.s32.totalorder %s16, 0
      %p32 = por %p30, %p31
      %p33 = scmp.ne.s32.totalorder %s21, %s22
      %p34 = scmp.eq.s32.totalorder %s17, 1
      %p35 = por %p33, %p34
      %p37 = scmp.ne.s32.totalorder %s22, %s36
      %p38 = scmp.eq.s32.totalorder %s17, 0
      %p39 = por %p37, %p38
      %s40 = ssub.s32 %s11, %s18
      %p41 = scmp.eq.s32.totalorder %s40, 0
      %s43 = sadd.s32 %s42, 1
      %s44 = scalar_select %p41, %s42, %s43
      %p47 = pneg %p41
      %p48 = scmp.eq.s32.totalorder %s11, 1
      %p49 = por %p47, %p48
      %p50 = scmp.ne.s32.totalorder %s42, %s45
      %p51 = scmp.eq.s32.totalorder %s11, 0
      %p52 = por %p50, %p51
      %p53 = scmp.ne.s32.totalorder %s42, %s45
      %p54 = scmp.eq.s32.totalorder %s16, 1
      %p55 = por %p53, %p54
      %p56 = scmp.ne.s32.totalorder %s45, %s46
      %p57 = scmp.eq.s32.totalorder %s16, 0
      %p58 = por %p56, %p57
      %p59 = scmp.ne.s32.totalorder %s45, %s46
      %p60 = scmp.eq.s32.totalorder %s17, 1
      %p61 = por %p59, %p60
      %p63 = scmp.ne.s32.totalorder %s46, %s62
      %p64 = scmp.eq.s32.totalorder %s17, 0
      %p65 = por %p63, %p64
      %p66 = scmp.le.s32.totalorder 1, %s11
      %p67 = scmp.lt.s32.totalorder %s11, 3
      %p68 = pnand %p66, %p67
      %p69 = pneg %p68
      // Predicated region
      $region9: #{tpu_custom_call.1} parent=5 // pred_check
        _
      $region10: #{tpu_custom_call.1} parent=5 // pred_check_branch
        %71 = sbr.rel (%p68) target = $region12
      $region11: #{tpu_custom_call.1} parent=5 // pred_region
        %s72 = ssub.s32 %s11, 1
        // Predicated region
        $region13: #{tpu_custom_call.1} parent=11 // pred_check
          %p73 = pneg %p32
        $region14: #{tpu_custom_call.1} parent=11 // pred_check_branch
          %75 = sbr.rel (%p73) target = $region16
        $region15: #{tpu_custom_call.1} parent=11 // pred_region
          %s77 = ssub.s32 32, 32
          %78 = vsyncadd [#allocation3], %s77
          %s80 = sshll.u32 [#allocation2], 4
          %s81 = int_to_ptr.vmem [resolvable:$true] %s80
          %83 = dma.hbm_to_vmem [thread:$0]  %s0, 32, %s81, [#allocation3]
        $region16: #{tpu_custom_call.1} parent=11 // pred_fallthru
          _
      $region12: #{tpu_custom_call.1} parent=5 // pred_fallthru
        _
      %p84 = scmp.lt.s32.totalorder %s11, 2
      // Predicated region
      $region17: #{tpu_custom_call.1} parent=5 // pred_check
        %p85 = pneg %p84
      $region18: #{tpu_custom_call.1} parent=5 // pred_check_branch
        %87 = sbr.rel (%p85) target = $region20
      $region19: #{tpu_custom_call.1} parent=5 // pred_region
        _
      $region20: #{tpu_custom_call.1} parent=5 // pred_fallthru
        _
      %p88 = scmp.le.s32.totalorder 1, %s11
      %p89 = scmp.lt.s32.totalorder %s11, 3
      %p90 = pnand %p88, %p89
      %p91 = pneg %p90
      // Predicated region
      $region21: #{tpu_custom_call.1} parent=5 // pred_check
        _
      $region22: #{tpu_custom_call.1} parent=5 // pred_check_branch
        %93 = sbr.rel (%p90) target = $region24
      $region23: #{tpu_custom_call.1} parent=5 // pred_region
        %s94 = ssub.s32 %s11, 1
        // Predicated region
        $region25: #{tpu_custom_call.1} parent=23 // pred_check
          %p95 = pneg %p32
        $region26: #{tpu_custom_call.1} parent=23 // pred_check_branch
          %97 = sbr.rel (%p95) target = $region28
        $region27: #{tpu_custom_call.1} parent=23 // pred_region
          %98 = dma.done [#allocation3], 32
        $region28: #{tpu_custom_call.1} parent=23 // pred_fallthru
          _
        %p99 = pneg %p32
        %p100 = pneg %p29
        %p101 = pneg %p58
        %p102 = pneg %p55
        %s103 = sand.u32 %s45, 1
        %s104 = scalar_lea.sflag [#allocation4], %s103
        %s105 = sand.u32 %s45, 1
        %s106 = smul.addr %s105, 8
        %s107 = scalar_lea.vmem [#allocation5], %s106
        %v108 = vld [vmem:[#allocation2] sm:$0x1]
        %v109 = vld [vmem:[#allocation2 + $0x1] sm:$0x1]
        %v110 = vlaneseq
        %v111 = vshrl.u32 %v110, 7
        %s112 = smul.u32 %s16, 8
        %v113 = vstv %s112
        %v114 = vadd.s32 %v111, %v113
        %v115 = vcvt.s32.f32 %v114
        %v116 = vlaneseq
        %v117 = vshrl.u32 %v116, 7
        %v118 = vsub.s32 0, %v117
        %v119 = vrot.slane %v108, %v118
        %v120 = vmul.f32 %v115, %v119
        %v121 = vlaneseq
        %v122 = vshrl.u32 %v121, 7
        %v123 = vsub.s32 0, %v122
        %v124 = vrot.slane %v109, %v123
        %v125 = vadd.f32 %v120, %v124
        %v126 = vand.u32 2147483647, %v125
        %vm127 = vcmp.le.f32.partialorder %v126, 0.7853982
        %vm128 = vcmp.lt.s32.totalorder %v125, 0
        %v129 = vand.u32 %v125, 2139095040
        %v130 = vshrl.u32 %v129, 23
        %v131 = vsub.s32 %v130, 127
        %v132 = vand.u32 2147483647, %v125
        %v133 = vand.u32 %v132, 8388607
        %v134 = vor.u32 %v133, 8388608
        %v135 = vsub.s32 0, %v134
        %v136 = vadd.s32 %v131, 1
        %vm137 = vcmp.gt.s32.totalorder %v136, 0
        %v138 = vsel %vm137, %v136, 0
        %v139 = vshrl.u32 %v138, 5
        %v140 = vand.u32 %v138, 31
        %v141 = vsub.s32 32, %v140
        %v142 = vshrl.u32 683565275, %v141
        %v143 = vshll.u32 683565275, %v140
        %v144 = vshrl.u32 2475754826, %v141
        %v145 = vor.u32 %v143, %v144
        %v146 = vshll.u32 2475754826, %v140
        %v147 = vshrl.u32 2131351028, %v141
        %v148 = vor.u32 %v146, %v147
        %v149 = vshll.u32 2131351028, %v140
        %v150 = vshrl.u32 2102212464, %v141
        %v151 = vor.u32 %v149, %v150
        %v152 = vshll.u32 2102212464, %v140
        %v153 = vshrl.u32 920167782, %v141
        %v154 = vor.u32 %v152, %v153
        %v155 = vshll.u32 920167782, %v140
        %v156 = vshrl.u32 1326507024, %v141
        %v157 = vor.u32 %v155, %v156
        %vm158 = vcmp.lt.s32.totalorder %v139, 1
        %vm159 = vcmp.lt.s32.totalorder %v139, 2
        %vm160 = vcmp.lt.s32.totalorder %v139, 3
        %vm161 = vcmp.lt.s32.totalorder %v139, 4
        %v162 = vsel %vm158, %v142, %v145
        %v163 = vsel %vm161, %v151, 2102212464
        %v164 = vsel %vm160, %v148, %v163
        %v165 = vsel %vm159, %v162, %v164
        %v166 = vsel %vm158, %v145, %v148
        %v167 = vsel %vm161, %v154, 920167782
        %v168 = vsel %vm160, %v151, %v167
        %v169 = vsel %vm159, %v166, %v168
        %v170 = vsel %vm158, %v148, %v151
        %v171 = vsel %vm161, %v157, 1326507024
        %v172 = vsel %vm160, %v154, %v171
        %v173 = vsel %vm159, %v170, %v172
        %v174 = vshll.u32 %v134, 8
        %v175 = vmul.u32.u64.compose %v174, %v173
        %v176 = vextract.low.u32 %v175
        %v177 = vextract.high.u32 %v175
        %v178 = vmul.u32.u64.compose %v174, %v169
        %v179 = vextract.low.u32 %v178
        %v180 = vextract.high.u32 %v178
        %v181 = vmul.u32 %v174, %v165
        %v182 = vadd.s32 %v177, %v179
        %vm183 = vc.u32 %v177, %v179
        %v184 = vadd.s32 %v180, 1
        %v185 = vsel %vm183, %v184, %v180
        %v186 = vadd.s32 %v181, %v185
        %v187 = vadd.s32 %v186, 536870912
        %v188 = vshrl.u32 %v187, 30
        %v189 = vshll.u32 %v188, 30
        %v190 = vsub.s32 %v186, %v189
        %vm191 = vcmp.lt.s32.totalorder %v190, 0
        %v192 = vsub.s32 0, %v190
        %v193 = vsel %vm191, %v192, %v190
        %v194 = vclz %v193
        %v195 = vsub.s32 %v194, 2
        %vm196 = vcmp.gt.s32.totalorder 0, %v195
        %v197 = vsel %vm196, 0, %v195
        %v198 = vsub.s32 32, %v197
        %v199 = vshll.u32 %v190, %v197
        %v200 = vshrl.u32 %v182, %v198
        %v201 = vor.u32 %v199, %v200
        %v202 = vsub.s32 4294967266, %v197
        %v203 = vadd.s32 %v202, 127
        %v204 = vshll.u32 %v203, 23
        %v205 = vor.u32 4788187, %v204
        %v206 = vand.u32 2147483647, %v205
        %v208 = vcvt.s32.f32 %v201
        %v209 = vmul.f32 %v208, %v206
        %v210 = vxor.u32 %v209, 2147483648
        %v211 = vsel %vm128, %v210, %v209
        %v212 = vsub.s32 4, %v188
        %v213 = vsel %vm128, %v212, %v188
        %v214 = vsel %vm127, %v125, %v211
        %v215 = vsel %vm127, 0, %v213
        %v216 = vcosq.f32.pop %v214
        %v217 = vsinq.f32.pop %v214
        %vm218 = vweird.f32 %v125
        %v219 = vadd.s32 %v215, 3
        %v220 = vand.u32 %v219, 3
        %vm221 = vcmp.lt.s32.totalorder %v220, 2
        %vm222 = vcmp.eq.s32.totalorder %v220, 0
        %v223 = vxor.u32 %v217, 2147483648
        %v224 = vsel %vm222, %v216, %v223
        %vm225 = vcmp.eq.s32.totalorder %v220, 2
        %v226 = vxor.u32 %v216, 2147483648
        %v227 = vsel %vm225, %v226, %v217
        %v228 = vsel %vm221, %v224, %v227
        %v229 = vsel %vm218, nan, %v228
        %vm230 = vcmask 261120
        %231 = vst.msk [vmem:[%s107] sm:$0xff] %vm230, %v229
        %s232 = sand.u32 %s45, 1
        %s233 = scalar_lea.sflag [#allocation4], %s232
        %s234 = sand.u32 %s45, 1
        %s235 = smul.addr %s234, 8
        %s236 = scalar_lea.vmem [#allocation5], %s235
        // Predicated region
        $region29: #{tpu_custom_call.1} parent=23 // pred_check
          %p237 = pneg %p55
        $region30: #{tpu_custom_call.1} parent=23 // pred_check_branch
          %239 = sbr.rel (%p237) target = $region32
        $region31: #{tpu_custom_call.1} parent=23 // pred_region
          %s241 = ssub.s32 128, 128
          %242 = vsyncadd %s233, %s241
          %s243 = smul.addr %s16, 128
          %s244 = scalar_lea.hbm %s1, %s243
          %s246 = sshll.u32 %s236, 4
          %s247 = int_to_ptr.vmem [resolvable:$true] %s246
          %249 = dma.vmem_to_hbm [thread:$0]  %s247, 128, %s244, %s233
        $region32: #{tpu_custom_call.1} parent=23 // pred_fallthru
          _
      $region24: #{tpu_custom_call.1} parent=5 // pred_fallthru
        _
      %p250 = scmp.le.s32.totalorder 2, %s11
      // Predicated region
      $region33: #{tpu_custom_call.1} parent=5 // pred_check
        %p251 = pneg %p250
      $region34: #{tpu_custom_call.1} parent=5 // pred_check_branch
        %253 = sbr.rel (%p251) target = $region36
      $region35: #{tpu_custom_call.1} parent=5 // pred_region
        %s254 = ssub.s32 %s11, 2
        // Predicated region
        $region37: #{tpu_custom_call.1} parent=35 // pred_check
          %p255 = pneg %p61
        $region38: #{tpu_custom_call.1} parent=35 // pred_check_branch
          %257 = sbr.rel (%p255) target = $region40
        $region39: #{tpu_custom_call.1} parent=35 // pred_region
          %s258 = sand.u32 %s46, 1
          %s259 = scalar_lea.sflag [#allocation4], %s258
          %s260 = sand.u32 %s46, 1
          %s261 = smul.addr %s260, 8
          %s262 = scalar_lea.vmem [#allocation5], %s261
          %263 = dma.done %s259, 128
        $region40: #{tpu_custom_call.1} parent=35 // pred_fallthru
          _
      $region36: #{tpu_custom_call.1} parent=5 // pred_fallthru
        _
    $region6: #{tpu_custom_call.1} parent=1 // loop_footer
      %s15 = sadd.s32 1, %s11
    $region7: #{tpu_custom_call.1} parent=1 // loop_footer_branch
      %10 = sbr.rel target = $region3
    $region8: #{tpu_custom_call.1} parent=1 // loop_exit
      _
    %264 = vsyncpa [#allocation3], 1
    %s265 = scalar_lea.sflag [#allocation3], 1
    %266 = vsyncpa %s265, 1
    %267 = vsyncpa [#allocation4], 1
    %s268 = scalar_lea.sflag [#allocation4], 1
    %269 = vsyncpa %s268, 1

</llo_original>
